<compile_context>
chip_gen: v7x
topology: tpu7x:2x2x1
jax: 0.10.0
libtpu: 0.0.40
codegen_flags: <defaults>
</compile_context>

<pallas_src>
import functools
import math

import jax
import jax.numpy as jnp
from jax.experimental import pallas as pl
from jax.experimental.pallas import tpu as pltpu


def _choose_tiles(B, S, H, itemsize, *,
                  target_bytes=1 << 20, max_tb=16, max_ts=4096):
    """Pick (tile_b, tile_s).

    Small-S regime (TSP): one seq tile per row is tiny, so tile over batch
    instead (fewer/fatter grid steps & DMAs).  Large-S regime: one batch row
    per step, seq tiles ~1 MiB, multiple of 128 so the [*, H, tile_s] output
    block stays lane-dense/unmasked; raggedness handled by a cdiv grid.
    """
    row_bytes = max(1, S * H * itemsize)       # one batch row of ref/ref_out
    if S <= max_ts and row_bytes < target_bytes:
        tb = int(max(1, min(B, max_tb, target_bytes // row_bytes)))
        return tb, S
    if S <= max_ts:
        return 1, S
    # Large S: ~target-byte tiles, multiple of 128, balanced across the grid.
    ts_cand = min(max_ts, max(128, (target_bytes // (H * itemsize)) // 128 * 128))
    n_tiles = -(-S // ts_cand)
    ts = ((-(-S // n_tiles)) + 127) // 128 * 128
    return 1, int(ts)


def attention_kernel(qp_ref, r_ref, wc_ref, bc_ref, v_ref,
                     refout_ref, logits_ref, *, tile_b, use_tanh, C):
    # Block shapes seen by the kernel:
    #   qp_ref:     (TILE_B, H, 1)       f32 query projection (hoisted)
    #   r_ref:      (TILE_B, TILE_S, H)  ref tile, hidden on lanes
    #   wc_ref:     (H, H)               Conv1d(H,H,1) weight squeezed [o, i]
    #   bc_ref:     (H, 1)
    #   v_ref:      (H, 1)
    #   refout_ref: (TILE_B, H, TILE_S)  conv'd ref, [B, H, S] layout,
    #                                    lane-dense on the seq axis
    #   logits_ref: (TILE_B, 1, TILE_S)  f32 logits, seq on lanes
    cdt = jnp.promote_types(wc_ref.dtype, r_ref.dtype)
    wc = wc_ref[...].astype(cdt)                               # (H, H)
    bc = bc_ref[...].astype(jnp.float32)                       # (H, 1)
    v = v_ref[...].astype(jnp.float32)                         # (H, 1)

    for b in range(tile_b):                                    # static unroll
        r = r_ref[b].astype(cdt)                               # (TILE_S, H)
        # 1x1 conv, H-major: Wc @ r^T on the MXU -> (H, TILE_S), f32 acc.
        proj = jax.lax.dot_general(
            wc, r, dimension_numbers=(((1,), (1,)), ((), ())),
            preferred_element_type=jnp.float32) + bc           # (H, TILE_S)

        t = jnp.tanh(qp_ref[b].astype(jnp.float32) + proj)     # (H, TILE_S)

        # V contraction: VPU multiply + sublane reduce over H -> lane-dense
        # (1, TILE_S) row (keeps the MXU/vex push slot free).
        logits = jnp.sum(v * t, axis=0, keepdims=True)         # (1, TILE_S)
        if use_tanh:
            logits = C * jnp.tanh(logits)

        refout_ref[b] = proj.astype(refout_ref.dtype)
        logits_ref[b] = logits.astype(logits_ref.dtype)


def attention_forward(query, ref, Wq, bq, Wc, bc, V, *, use_tanh=False, C=10.0):
    """Bahdanau attention forward.

    query: [B, H], ref: [B, S, H] -> (ref_out [B, H, S], logits [B, S]).
    Wq/bq: nn.Linear(H, H) params; Wc/bc: nn.Conv1d(H, H, 1) weight squeezed
    to [H, H] plus bias [H]; V: [H].
    """
    B, S, H = ref.shape
    assert query.shape == (B, H)

    out_dtype = jnp.result_type(ref.dtype, Wc.dtype)
    itemsize = max(jnp.dtype(ref.dtype).itemsize, jnp.dtype(out_dtype).itemsize)
    tile_b, tile_s = _choose_tiles(B, S, H, itemsize)
    grid = (pl.cdiv(B, tile_b), pl.cdiv(S, tile_s))

    # Query projection hoisted out of the kernel: trivial [B,H]@[H,H] matmul,
    # invariant along the seq axis -> no scratch carry, both axes "parallel".
    q_proj = (jnp.dot(query, Wq.T, preferred_element_type=jnp.float32)
              + bq.astype(jnp.float32)).reshape(B, H, 1)       # [B, H, 1] f32

    kernel = functools.partial(attention_kernel, tile_b=tile_b,
                               use_tanh=bool(use_tanh), C=float(C))

    cost = pl.CostEstimate(
        flops=2 * B * S * H * H + 2 * B * S * H,
        transcendentals=B * S * H + (B * S if use_tanh else 0),
        bytes_accessed=int(B * S * H * jnp.dtype(ref.dtype).itemsize
                           + B * H * S * jnp.dtype(out_dtype).itemsize
                           + B * S * 4 + B * H * 4
                           + H * H * jnp.dtype(Wc.dtype).itemsize + 8 * H),
    )

    ref_out, logits = pl.pallas_call(
        kernel,
        grid=grid,
        in_specs=[
            pl.BlockSpec((tile_b, H, 1), lambda b, s: (b, 0, 0)),     # q_proj
            pl.BlockSpec((tile_b, tile_s, H), lambda b, s: (b, s, 0)),  # ref
            pl.BlockSpec((H, H), lambda b, s: (0, 0)),                # Wc
            pl.BlockSpec((H, 1), lambda b, s: (0, 0)),                # bc
            pl.BlockSpec((H, 1), lambda b, s: (0, 0)),                # V
        ],
        out_specs=(
            pl.BlockSpec((tile_b, H, tile_s), lambda b, s: (b, 0, s)),  # ref_out
            pl.BlockSpec((tile_b, 1, tile_s), lambda b, s: (b, 0, s)),  # logits
        ),
        out_shape=(
            jax.ShapeDtypeStruct((B, H, S), out_dtype),
            jax.ShapeDtypeStruct((B, 1, S), jnp.float32),   # keep logits f32
        ),
        compiler_params=pltpu.CompilerParams(
            dimension_semantics=("parallel", "parallel"),
            # Per-step footprint is ~15 MiB worst case (double-buffered ~1 MiB
            # streamed blocks + f32 temps + resident weights): comfortably
            # under 48 MiB, which itself stays under v7x's 64 MiB physical.
            vmem_limit_bytes=48 * 1024 * 1024,
        ),
        cost_estimate=cost,
    )(q_proj, ref, Wc, bc.reshape(H, 1), V.reshape(H, 1))

    return ref_out, logits.reshape(B, S)


def _reference(query, ref, Wq, bq, Wc, bc, V, use_tanh=False, C=10.0):
    # Pure-JAX mirror of the PyTorch forward (Bahdanau branch) for validation.
    q_proj = query @ Wq.T + bq                                   # [B, H]
    ref_t = jnp.transpose(ref, (0, 2, 1))                        # [B, H, S]
    ref_conv = jnp.einsum('oi,bis->bos', Wc, ref_t) + bc[:, None]
    t = jnp.tanh(q_proj[:, :, None] + ref_conv)                  # [B, H, S]
    logits = jnp.einsum('h,bhs->bs', V, t)                       # [B, S]
    if use_tanh:
        logits = C * jnp.tanh(logits)
    return ref_conv, logits


if __name__ == "__main__":
    B, S, H = 2, 8, 32
    key = jax.random.PRNGKey(0)
    k = jax.random.split(key, 7)
    bound = 1.0 / math.sqrt(H)

    # Deterministic init mirroring torch defaults (uniform(-1/sqrt(H), 1/sqrt(H))).
    Wq = jax.random.uniform(k[0], (H, H), jnp.float32, -bound, bound)
    bq = jax.random.uniform(k[1], (H,), jnp.float32, -bound, bound)
    Wc = jax.random.uniform(k[2], (H, H), jnp.float32, -bound, bound)  # Conv1d(H,H,1) weight squeezed
    bc = jax.random.uniform(k[3], (H,), jnp.float32, -bound, bound)
    V = jax.random.uniform(k[4], (H,), jnp.float32, -bound, bound)

    query = jax.random.normal(k[5], (B, H), jnp.float32)
    ref = jax.random.normal(k[6], (B, S, H), jnp.float32)

    ref_out, logits = attention_forward(query, ref, Wq, bq, Wc, bc, V,
                                        use_tanh=False)
    jax.block_until_ready((ref_out, logits))

    ref_out_gold, logits_gold = _reference(query, ref, Wq, bq, Wc, bc, V,
                                           use_tanh=False)
    assert ref_out.shape == (B, H, S) and logits.shape == (B, S)
    assert jnp.allclose(ref_out, ref_out_gold, atol=2e-5, rtol=1e-5)
    assert jnp.allclose(logits, logits_gold, atol=2e-5, rtol=1e-5)

    # Also exercise the use_tanh=True (clipped logits) path once.
    _, logits_c = attention_forward(query, ref, Wq, bq, Wc, bc, V,
                                    use_tanh=True, C=10.0)
    jax.block_until_ready(logits_c)
    _, logits_c_gold = _reference(query, ref, Wq, bq, Wc, bc, V,
                                  use_tanh=True, C=10.0)
    assert jnp.allclose(logits_c, logits_c_gold, atol=2e-5, rtol=1e-5)

    print("KERNEL_OK")
</pallas_src>

<mosaic_0001>
module attributes {stable_mosaic.version = 11 : i64} {
  func.func @attention_kernel(%arg0: i32, %arg1: i32, %arg2: memref<2x32x1xf32, #tpu.memory_space<vmem>>, %arg3: memref<2x8x32xf32, #tpu.memory_space<vmem>>, %arg4: memref<32x32xf32, #tpu.memory_space<vmem>>, %arg5: memref<32x1xf32, #tpu.memory_space<vmem>>, %arg6: memref<32x1xf32, #tpu.memory_space<vmem>>, %arg7: memref<2x32x8xf32, #tpu.memory_space<vmem>>, %arg8: memref<2x1x8xf32, #tpu.memory_space<vmem>>) attributes {dimension_semantics = [#tpu.dimension_semantics<parallel>, #tpu.dimension_semantics<parallel>], iteration_bounds = array<i64: 1, 1>, scalar_prefetch = 0 : i64, scratch_operands = 0 : i64, tpu.core_type = #tpu.core_type<tc>, window_params = [{transform_indices = @transform_0, window_bounds = array<i64: 2, 32, 1>}, {transform_indices = @transform_1, window_bounds = array<i64: 2, 8, 32>}, {pipeline_mode = #tpu.pipeline_mode<synchronous>, transform_indices = @transform_2, window_bounds = array<i64: 32, 32>}, {pipeline_mode = #tpu.pipeline_mode<synchronous>, transform_indices = @transform_3, window_bounds = array<i64: 32, 1>}, {pipeline_mode = #tpu.pipeline_mode<synchronous>, transform_indices = @transform_4, window_bounds = array<i64: 32, 1>}, {transform_indices = @transform_5, window_bounds = array<i64: 2, 32, 8>}, {transform_indices = @transform_6, window_bounds = array<i64: 2, 1, 8>}]} {
    %c0 = arith.constant 0 : index
    %c0_0 = arith.constant 0 : index
    %0 = vector.load %arg4[%c0, %c0_0] : memref<32x32xf32, #tpu.memory_space<vmem>>, vector<32x32xf32>
    %c0_1 = arith.constant 0 : index
    %c0_2 = arith.constant 0 : index
    %1 = vector.load %arg5[%c0_1, %c0_2] : memref<32x1xf32, #tpu.memory_space<vmem>>, vector<32x1xf32>
    %c0_3 = arith.constant 0 : index
    %c0_4 = arith.constant 0 : index
    %2 = vector.load %arg6[%c0_3, %c0_4] : memref<32x1xf32, #tpu.memory_space<vmem>>, vector<32x1xf32>
    %c0_5 = arith.constant 0 : index
    %c0_6 = arith.constant 0 : index
    %c0_7 = arith.constant 0 : index
    %3 = vector.load %arg3[%c0_5, %c0_6, %c0_7] : memref<2x8x32xf32, #tpu.memory_space<vmem>>, vector<1x8x32xf32>
    %4 = vector.shape_cast %3 : vector<1x8x32xf32> to vector<8x32xf32>
    %cst = arith.constant dense<0.000000e+00> : vector<32x8xf32>
    %5 = tpu.matmul %0, %4, %cst {dimension_numbers = #tpu.dot_dimension_numbers<[1], [1], [0], [0], [0, 0, 1, 0], [], []>} : vector<32x32xf32>, vector<8x32xf32>, vector<32x8xf32> -> vector<32x8xf32>
    %6 = vector.broadcast %1 : vector<32x1xf32> to vector<32x8xf32>
    %7 = arith.addf %5, %6 : vector<32x8xf32>
    %c0_8 = arith.constant 0 : index
    %c0_9 = arith.constant 0 : index
    %c0_10 = arith.constant 0 : index
    %8 = vector.load %arg2[%c0_8, %c0_9, %c0_10] : memref<2x32x1xf32, #tpu.memory_space<vmem>>, vector<1x32x1xf32>
    %9 = vector.shape_cast %8 : vector<1x32x1xf32> to vector<32x1xf32>
    %10 = vector.broadcast %9 : vector<32x1xf32> to vector<32x8xf32>
    %11 = arith.addf %10, %7 : vector<32x8xf32>
    %12 = math.tanh %11 : vector<32x8xf32>
    %13 = vector.broadcast %2 : vector<32x1xf32> to vector<32x8xf32>
    %14 = arith.mulf %13, %12 : vector<32x8xf32>
    %cst_11 = arith.constant dense<0.000000e+00> : vector<8xf32>
    %15 = vector.multi_reduction <add>, %14, %cst_11 [0] : vector<32x8xf32> to vector<8xf32>
    %16 = vector.shape_cast %15 : vector<8xf32> to vector<1x8xf32>
    %c0_12 = arith.constant 0 : index
    %c0_13 = arith.constant 0 : index
    %c0_14 = arith.constant 0 : index
    %17 = vector.load %arg7[%c0_12, %c0_13, %c0_14] : memref<2x32x8xf32, #tpu.memory_space<vmem>>, vector<1x32x8xf32>
    %18 = vector.shape_cast %17 : vector<1x32x8xf32> to vector<32x8xf32>
    %19 = vector.shape_cast %7 : vector<32x8xf32> to vector<1x32x8xf32>
    tpu.vector_store %arg7[%c0_12, %c0_13, %c0_14], %19 {strides = array<i32>} : memref<2x32x8xf32, #tpu.memory_space<vmem>>, vector<1x32x8xf32>,
    %c0_15 = arith.constant 0 : index
    %c0_16 = arith.constant 0 : index
    %c0_17 = arith.constant 0 : index
    %20 = vector.load %arg8[%c0_15, %c0_16, %c0_17] : memref<2x1x8xf32, #tpu.memory_space<vmem>>, vector<1x1x8xf32>
    %21 = vector.shape_cast %20 : vector<1x1x8xf32> to vector<1x8xf32>
    %22 = vector.shape_cast %16 : vector<1x8xf32> to vector<1x1x8xf32>
    tpu.vector_store %arg8[%c0_15, %c0_16, %c0_17], %22 {strides = array<i32>} : memref<2x1x8xf32, #tpu.memory_space<vmem>>, vector<1x1x8xf32>,
    %c1 = arith.constant 1 : index
    %c0_18 = arith.constant 0 : index
    %c0_19 = arith.constant 0 : index
    %23 = vector.load %arg3[%c1, %c0_18, %c0_19] : memref<2x8x32xf32, #tpu.memory_space<vmem>>, vector<1x8x32xf32>
    %24 = vector.shape_cast %23 : vector<1x8x32xf32> to vector<8x32xf32>
    %cst_20 = arith.constant dense<0.000000e+00> : vector<32x8xf32>
    %25 = tpu.matmul %0, %24, %cst_20 {dimension_numbers = #tpu.dot_dimension_numbers<[1], [1], [0], [0], [0, 0, 1, 0], [], []>} : vector<32x32xf32>, vector<8x32xf32>, vector<32x8xf32> -> vector<32x8xf32>
    %26 = vector.broadcast %1 : vector<32x1xf32> to vector<32x8xf32>
    %27 = arith.addf %25, %26 : vector<32x8xf32>
    %c1_21 = arith.constant 1 : index
    %c0_22 = arith.constant 0 : index
    %c0_23 = arith.constant 0 : index
    %28 = vector.load %arg2[%c1_21, %c0_22, %c0_23] : memref<2x32x1xf32, #tpu.memory_space<vmem>>, vector<1x32x1xf32>
    %29 = vector.shape_cast %28 : vector<1x32x1xf32> to vector<32x1xf32>
    %30 = vector.broadcast %29 : vector<32x1xf32> to vector<32x8xf32>
    %31 = arith.addf %30, %27 : vector<32x8xf32>
    %32 = math.tanh %31 : vector<32x8xf32>
    %33 = vector.broadcast %2 : vector<32x1xf32> to vector<32x8xf32>
    %34 = arith.mulf %33, %32 : vector<32x8xf32>
    %cst_24 = arith.constant dense<0.000000e+00> : vector<8xf32>
    %35 = vector.multi_reduction <add>, %34, %cst_24 [0] : vector<32x8xf32> to vector<8xf32>
    %36 = vector.shape_cast %35 : vector<8xf32> to vector<1x8xf32>
    %c1_25 = arith.constant 1 : index
    %c0_26 = arith.constant 0 : index
    %c0_27 = arith.constant 0 : index
    %37 = vector.load %arg7[%c1_25, %c0_26, %c0_27] : memref<2x32x8xf32, #tpu.memory_space<vmem>>, vector<1x32x8xf32>
    %38 = vector.shape_cast %37 : vector<1x32x8xf32> to vector<32x8xf32>
    %39 = vector.shape_cast %27 : vector<32x8xf32> to vector<1x32x8xf32>
    tpu.vector_store %arg7[%c1_25, %c0_26, %c0_27], %39 {strides = array<i32>} : memref<2x32x8xf32, #tpu.memory_space<vmem>>, vector<1x32x8xf32>,
    %c1_28 = arith.constant 1 : index
    %c0_29 = arith.constant 0 : index
    %c0_30 = arith.constant 0 : index
    %40 = vector.load %arg8[%c1_28, %c0_29, %c0_30] : memref<2x1x8xf32, #tpu.memory_space<vmem>>, vector<1x1x8xf32>
    %41 = vector.shape_cast %40 : vector<1x1x8xf32> to vector<1x8xf32>
    %42 = vector.shape_cast %36 : vector<1x8xf32> to vector<1x1x8xf32>
    tpu.vector_store %arg8[%c1_28, %c0_29, %c0_30], %42 {strides = array<i32>} : memref<2x1x8xf32, #tpu.memory_space<vmem>>, vector<1x1x8xf32>,
    return
  }
  func.func @transform_0(%arg0: i32, %arg1: i32) -> (i32, i32, i32) {
    %c0_i32 = arith.constant 0 : i32
    %c0_i32_0 = arith.constant 0 : i32
    %c0_i32_1 = arith.constant 0 : i32
    return %arg0, %c0_i32, %c0_i32_0 : i32, i32, i32
  }
  func.func @transform_1(%arg0: i32, %arg1: i32) -> (i32, i32, i32) {
    %c0_i32 = arith.constant 0 : i32
    %c0_i32_0 = arith.constant 0 : i32
    return %arg0, %arg1, %c0_i32 : i32, i32, i32
  }
  func.func @transform_2(%arg0: i32, %arg1: i32) -> (i32, i32) {
    %c0_i32 = arith.constant 0 : i32
    %c0_i32_0 = arith.constant 0 : i32
    %c0_i32_1 = arith.constant 0 : i32
    return %c0_i32, %c0_i32_0 : i32, i32
  }
  func.func @transform_3(%arg0: i32, %arg1: i32) -> (i32, i32) {
    %c0_i32 = arith.constant 0 : i32
    %c0_i32_0 = arith.constant 0 : i32
    %c0_i32_1 = arith.constant 0 : i32
    return %c0_i32, %c0_i32_0 : i32, i32
  }
  func.func @transform_4(%arg0: i32, %arg1: i32) -> (i32, i32) {
    %c0_i32 = arith.constant 0 : i32
    %c0_i32_0 = arith.constant 0 : i32
    %c0_i32_1 = arith.constant 0 : i32
    return %c0_i32, %c0_i32_0 : i32, i32
  }
  func.func @transform_5(%arg0: i32, %arg1: i32) -> (i32, i32, i32) {
    %c0_i32 = arith.constant 0 : i32
    %c0_i32_0 = arith.constant 0 : i32
    return %arg0, %c0_i32, %arg1 : i32, i32, i32
  }
  func.func @transform_6(%arg0: i32, %arg1: i32) -> (i32, i32, i32) {
    %c0_i32 = arith.constant 0 : i32
    %c0_i32_0 = arith.constant 0 : i32
    return %arg0, %c0_i32, %arg1 : i32, i32, i32
  }
}

</mosaic_0001>

<llo_original>
// kernel: tpu_custom_call.1
$region0: #{tpu_custom_call.1}
  #allocation0 [shape = 'u32[]', space=smem, size = 0x4, offset = 0x4, fixed_abs, tag = 'smem constant byte address 0x4 - core index']
  #allocation1 [shape = 'u32[144,128]{1,0:T(1,128)}', space=vmem, size = 0x12000, scoped, tag = 'internal scratch']
  %s0 = inlined_call_operand.vmem [shape: f32[2,32,1], index: 0, kind: input, shape index: {}]
  %s1 = inlined_call_operand.vmem [shape: f32[2,8,32], index: 1, kind: input, shape index: {}]
  %s2 = inlined_call_operand.vmem [shape: f32[32,32], index: 2, kind: input, shape index: {}]
  %s3 = inlined_call_operand.vmem [shape: f32[32,1], index: 3, kind: input, shape index: {}]
  %s4 = inlined_call_operand.vmem [shape: f32[32,1], index: 4, kind: input, shape index: {}]
  %s5 = inlined_call_operand.vmem [shape: f32[2,32,8], index: 5, kind: output, shape index: {0}]
  %s6 = inlined_call_operand.hbm [shape: f32[2,1,8], index: 6, kind: output, shape index: {1}]
  %7 = xla_tuple %s5, %s6
  %s8 = sld [smem:[#allocation0]]
  $region38: #{tpu_custom_call.1} parent=0
    _
  %s10 = ssub.s32 1, %s8
  %s11 = scalar_select 0, %s10, %s8
  $region1: #{tpu_custom_call.1} parent=0
    #allocation2 [shape = 'u8[1024]{0}', space=vmem, size = 0x400, scoped, tag = 'output window, operand 1, single buffered']
    #allocation3 [shape = 's32[1]{0}', space=sflag, size = 0x4, scoped, tag = 'scoped memory for tpu_custom_call.1']
    %12 = vsyncpa [#allocation3], 0
    // Predicated region
    $region2: #{tpu_custom_call.1} parent=1 // pred_check
      _
    $region3: #{tpu_custom_call.1} parent=1 // pred_check_branch
      %14 = sbr.rel (0) target = $region5
    $region4: #{tpu_custom_call.1} parent=1 // pred_region
      _
    $region5: #{tpu_custom_call.1} parent=1 // pred_fallthru
      _
    // Predicated region
    $region6: #{tpu_custom_call.1} parent=1 // pred_check
      _
    $region7: #{tpu_custom_call.1} parent=1 // pred_check_branch
      %16 = sbr.rel (0) target = $region9
    $region8: #{tpu_custom_call.1} parent=1 // pred_region
      _
    $region9: #{tpu_custom_call.1} parent=1 // pred_fallthru
      _
    // Predicated region
    $region10: #{tpu_custom_call.1} parent=1 // pred_check
      _
    $region11: #{tpu_custom_call.1} parent=1 // pred_check_branch
      %18 = sbr.rel (0) target = $region13
    $region12: #{tpu_custom_call.1} parent=1 // pred_region
      _
    $region13: #{tpu_custom_call.1} parent=1 // pred_fallthru
      _
    // Predicated region
    $region14: #{tpu_custom_call.1} parent=1 // pred_check
      _
    $region15: #{tpu_custom_call.1} parent=1 // pred_check_branch
      %20 = sbr.rel (0) target = $region17
    $region16: #{tpu_custom_call.1} parent=1 // pred_region
      _
    $region17: #{tpu_custom_call.1} parent=1 // pred_fallthru
      _
    // Predicated region
    $region18: #{tpu_custom_call.1} parent=1 // pred_check
      _
    $region19: #{tpu_custom_call.1} parent=1 // pred_check_branch
      %22 = sbr.rel (0) target = $region21
    $region20: #{tpu_custom_call.1} parent=1 // pred_region
      _
    $region21: #{tpu_custom_call.1} parent=1 // pred_fallthru
      _
    %v23 = vld [vmem:[%s2] sm:$0xff]
    %v24 = vld [vmem:[%s2 + $0x8] sm:$0xff]
    %v25 = vld [vmem:[%s2 + $0x10] sm:$0xff]
    %v26 = vld [vmem:[%s2 + $0x18] sm:$0xff]
    %v27 = vld [vmem:[%s3] sm:$0xff]
    %v28 = vld [vmem:[%s3 + $0x8] sm:$0xff]
    %v29 = vld [vmem:[%s3 + $0x10] sm:$0xff]
    %v30 = vld [vmem:[%s3 + $0x18] sm:$0xff]
    %v31 = vld [vmem:[%s4] sm:$0xff]
    %v32 = vld [vmem:[%s4 + $0x8] sm:$0xff]
    %v33 = vld [vmem:[%s4 + $0x10] sm:$0xff]
    %v34 = vld [vmem:[%s4 + $0x18] sm:$0xff]
    %v35 = vld [vmem:[%s1] sm:$0xff]
    %37 = vset.pattern.permute.xlu0 0
    %38 = vperm.xlu0 %37, %v27
    %v39 = vpop.permute.xlu0 %38
    %42 = vset.pattern.permute.xlu0 0
    %43 = vperm.xlu0 %42, %v28
    %v44 = vpop.permute.xlu0 %43
    %47 = vset.pattern.permute.xlu0 0
    %48 = vperm.xlu0 %47, %v29
    %v49 = vpop.permute.xlu0 %48
    %52 = vset.pattern.permute.xlu0 0
    %53 = vperm.xlu0 %52, %v30
    %v54 = vpop.permute.xlu0 %53
    %vm56 = vcmask 261120
    %v58 = vsel %vm56, %v23, 0
    %v61 = vsel %vm56, %v24, 0
    %v64 = vsel %vm56, %v25, 0
    %v67 = vsel %vm56, %v26, 0
    %v70 = vsel %vm56, %v35, 0
    %72 = vmatprep.subr.mxu0 0.0
    %73 = vmatpush1.xpose.msra.mxu0 %v70
    %74 = vmatprep.subr.mxu0 0.0
    %75 = vmatpush1.xpose.msra.mxu0 0.0
    %76 = vmatprep.subr.mxu0 0.0
    %77 = vmatpush1.xpose.msra.mxu0 0.0
    %78 = vmatprep.subr.mxu0 0.0
    %79 = vmatpush1.xpose.msra.mxu0 0.0
    %80 = vmatprep.subr.mxu0 0.0
    %81 = vmatpush1.xpose.msra.mxu0 0.0
    %82 = vmatprep.subr.mxu0 0.0
    %83 = vmatpush1.xpose.msra.mxu0 0.0
    %84 = vmatprep.subr.mxu0 0.0
    %85 = vmatpush1.xpose.msra.mxu0 0.0
    %86 = vmatprep.subr.mxu0 0.0
    %87 = vmatpush1.xpose.msra.mxu0 0.0
    %88 = vmatprep.subr.mxu0 0.0
    %89 = vmatpush1.xpose.msra.mxu0 0.0
    %90 = vmatprep.subr.mxu0 0.0
    %91 = vmatpush1.xpose.msra.mxu0 0.0
    %92 = vmatprep.subr.mxu0 0.0
    %93 = vmatpush1.xpose.msra.mxu0 0.0
    %94 = vmatprep.subr.mxu0 0.0
    %95 = vmatpush1.xpose.msra.mxu0 0.0
    %96 = vmatprep.subr.mxu0 0.0
    %97 = vmatpush1.xpose.msra.mxu0 0.0
    %98 = vmatprep.subr.mxu0 0.0
    %99 = vmatpush1.xpose.msra.mxu0 0.0
    %100 = vmatprep.subr.mxu0 0.0
    %101 = vmatpush1.xpose.msra.mxu0 0.0
    %102 = vmatprep.subr.mxu0 0.0
    %103 = vmatpush1.xpose.msra.mxu0 0.0
    %104 = vmatprep.subr.mxu0 0.0
    %105 = vmatpush1.xpose.msra.mxu0 0.0
    %106 = vmatprep.subr.mxu0 0.0
    %107 = vmatpush1.xpose.msra.mxu0 0.0
    %108 = vmatprep.subr.mxu0 0.0
    %109 = vmatpush1.xpose.msra.mxu0 0.0
    %110 = vmatprep.subr.mxu0 0.0
    %111 = vmatpush1.xpose.msra.mxu0 0.0
    %112 = vmatprep.subr.mxu0 0.0
    %113 = vmatpush1.xpose.msra.mxu0 0.0
    %114 = vmatprep.subr.mxu0 0.0
    %115 = vmatpush1.xpose.msra.mxu0 0.0
    %116 = vmatprep.subr.mxu0 0.0
    %117 = vmatpush1.xpose.msra.mxu0 0.0
    %118 = vmatprep.subr.mxu0 0.0
    %119 = vmatpush1.xpose.msra.mxu0 0.0
    %120 = vmatprep.subr.mxu0 0.0
    %121 = vmatpush1.xpose.msra.mxu0 0.0
    %122 = vmatprep.subr.mxu0 0.0
    %123 = vmatpush1.xpose.msra.mxu0 0.0
    %124 = vmatprep.subr.mxu0 0.0
    %125 = vmatpush1.xpose.msra.mxu0 0.0
    %126 = vmatprep.subr.mxu0 0.0
    %127 = vmatpush1.xpose.msra.mxu0 0.0
    %128 = vmatprep.subr.mxu0 0.0
    %129 = vmatpush1.xpose.msra.mxu0 0.0
    %130 = vmatprep.subr.mxu0 0.0
    %131 = vmatpush1.xpose.msra.mxu0 0.0
    %132 = vmatprep.subr.mxu0 0.0
    %133 = vmatpush1.xpose.msra.mxu0 0.0
    %134 = vmatprep.subr.mxu0 0.0
    %135 = vmatpush1.xpose.msra.mxu0 0.0
    %136 = vmatprep.mubr.f32.mxu0 0.0
    %137 = vmatmul.mubr.f32.gmra.mrb[0].mxu0 %v58
    %v138 = vpop.f32.mrb[0].mxu0
    %v139 = vadd.f32 %v39, %v138
    %v140 = vpop.f32.mrb[0].mxu0
    %141 = vmatprep.mubr.f32.mxu0 0.0
    %142 = vmatmul.mubr.f32.gmra.mrb[0].mxu0 %v61
    %v143 = vpop.f32.mrb[0].mxu0
    %v144 = vadd.f32 %v44, %v143
    %v145 = vpop.f32.mrb[0].mxu0
    %146 = vmatprep.mubr.f32.mxu0 0.0
    %147 = vmatmul.mubr.f32.gmra.mrb[0].mxu0 %v64
    %v148 = vpop.f32.mrb[0].mxu0
    %v149 = vadd.f32 %v49, %v148
    %v150 = vpop.f32.mrb[0].mxu0
    %151 = vmatprep.mubr.f32.mxu0 0.0
    %152 = vmatmul.mubr.f32.gmra.mrb[0].mxu0 %v67
    %v153 = vpop.f32.mrb[0].mxu0
    %v154 = vadd.f32 %v54, %v153
    %v155 = vpop.f32.mrb[0].mxu0
    %156 = vdwg.mxu0
    %v157 = vld [vmem:[%s0] sm:$0xff]
    %v158 = vld [vmem:[%s0 + $0x8] sm:$0xff]
    %v159 = vld [vmem:[%s0 + $0x10] sm:$0xff]
    %v160 = vld [vmem:[%s0 + $0x18] sm:$0xff]
    %162 = vset.pattern.permute.xlu0 0
    %163 = vperm.xlu0 %162, %v157
    %v164 = vpop.permute.xlu0 %163
    %167 = vset.pattern.permute.xlu0 0
    %168 = vperm.xlu0 %167, %v158
    %v169 = vpop.permute.xlu0 %168
    %172 = vset.pattern.permute.xlu0 0
    %173 = vperm.xlu0 %172, %v159
    %v174 = vpop.permute.xlu0 %173
    %177 = vset.pattern.permute.xlu0 0
    %178 = vperm.xlu0 %177, %v160
    %v179 = vpop.permute.xlu0 %178
    %v181 = vadd.f32 %v164, %v139
    %v182 = vadd.f32 %v169, %v144
    %v183 = vadd.f32 %v174, %v149
    %v184 = vadd.f32 %v179, %v154
    %v185 = vtanh.pop %v181
    %v186 = vtanh.pop %v182
    %v187 = vtanh.pop %v183
    %v188 = vtanh.pop %v184
    %190 = vset.pattern.permute.xlu0 0
    %191 = vperm.xlu0 %190, %v31
    %v192 = vpop.permute.xlu0 %191
    %195 = vset.pattern.permute.xlu0 0
    %196 = vperm.xlu0 %195, %v32
    %v197 = vpop.permute.xlu0 %196
    %200 = vset.pattern.permute.xlu0 0
    %201 = vperm.xlu0 %200, %v33
    %v202 = vpop.permute.xlu0 %201
    %205 = vset.pattern.permute.xlu0 0
    %206 = vperm.xlu0 %205, %v34
    %v207 = vpop.permute.xlu0 %206
    %v209 = vmul.f32 %v192, %v185
    %v210 = vmul.f32 %v197, %v186
    %v211 = vmul.f32 %v202, %v187
    %v212 = vmul.f32 %v207, %v188
    %vm213 = vcmask 64512
    %v214 = vsel %vm213, %v209, 0.0
    %v215 = vsel %vm213, %v210, 0.0
    %v216 = vadd.f32 %v214, %v215
    %v217 = vsel %vm213, %v211, 0.0
    %v218 = vadd.f32 %v216, %v217
    %v219 = vsel %vm213, %v212, 0.0
    %v220 = vadd.f32 %v218, %v219
    %v221 = vrot.slane %v220, 4
    %v222 = vadd.f32 %v220, %v221
    %v223 = vrot.slane %v222, 2
    %v224 = vadd.f32 %v222, %v223
    %v225 = vrot.slane %v224, 1
    %v226 = vadd.f32 %v224, %v225
    %227 = vst.msk [vmem:[%s5] sm:$0xff] %vm213, %v139
    %228 = vst.msk [vmem:[%s5 + $0x8] sm:$0xff] %vm213, %v144
    %229 = vst.msk [vmem:[%s5 + $0x10] sm:$0xff] %vm213, %v149
    %230 = vst.msk [vmem:[%s5 + $0x18] sm:$0xff] %vm213, %v154
    %vm231 = vcmask 57344
    %232 = vst.msk [vmem:[#allocation2] sm:$0x1] %vm231, %v226
    %s233 = scalar_lea.vmem %s1, 8
    %v234 = vld [vmem:[%s233] sm:$0xff]
    %v236 = vsel %vm56, %v234, 0
    %238 = vmatprep.subr.mxu0 0.0
    %239 = vmatpush1.xpose.msra.mxu0 %v236
    %240 = vmatprep.subr.mxu0 0.0
    %241 = vmatpush1.xpose.msra.mxu0 0.0
    %242 = vmatprep.subr.mxu0 0.0
    %243 = vmatpush1.xpose.msra.mxu0 0.0
    %244 = vmatprep.subr.mxu0 0.0
    %245 = vmatpush1.xpose.msra.mxu0 0.0
    %246 = vmatprep.subr.mxu0 0.0
    %247 = vmatpush1.xpose.msra.mxu0 0.0
    %248 = vmatprep.subr.mxu0 0.0
    %249 = vmatpush1.xpose.msra.mxu0 0.0
    %250 = vmatprep.subr.mxu0 0.0
    %251 = vmatpush1.xpose.msra.mxu0 0.0
    %252 = vmatprep.subr.mxu0 0.0
    %253 = vmatpush1.xpose.msra.mxu0 0.0
    %254 = vmatprep.subr.mxu0 0.0
    %255 = vmatpush1.xpose.msra.mxu0 0.0
    %256 = vmatprep.subr.mxu0 0.0
    %257 = vmatpush1.xpose.msra.mxu0 0.0
    %258 = vmatprep.subr.mxu0 0.0
    %259 = vmatpush1.xpose.msra.mxu0 0.0
    %260 = vmatprep.subr.mxu0 0.0
    %261 = vmatpush1.xpose.msra.mxu0 0.0
    %262 = vmatprep.subr.mxu0 0.0
    %263 = vmatpush1.xpose.msra.mxu0 0.0
    %264 = vmatprep.subr.mxu0 0.0
    %265 = vmatpush1.xpose.msra.mxu0 0.0
    %266 = vmatprep.subr.mxu0 0.0
    %267 = vmatpush1.xpose.msra.mxu0 0.0
    %268 = vmatprep.subr.mxu0 0.0
    %269 = vmatpush1.xpose.msra.mxu0 0.0
    %270 = vmatprep.subr.mxu0 0.0
    %271 = vmatpush1.xpose.msra.mxu0 0.0
    %272 = vmatprep.subr.mxu0 0.0
    %273 = vmatpush1.xpose.msra.mxu0 0.0
    %274 = vmatprep.subr.mxu0 0.0
    %275 = vmatpush1.xpose.msra.mxu0 0.0
    %276 = vmatprep.subr.mxu0 0.0
    %277 = vmatpush1.xpose.msra.mxu0 0.0
    %278 = vmatprep.subr.mxu0 0.0
    %279 = vmatpush1.xpose.msra.mxu0 0.0
    %280 = vmatprep.subr.mxu0 0.0
    %281 = vmatpush1.xpose.msra.mxu0 0.0
    %282 = vmatprep.subr.mxu0 0.0
    %283 = vmatpush1.xpose.msra.mxu0 0.0
    %284 = vmatprep.subr.mxu0 0.0
    %285 = vmatpush1.xpose.msra.mxu0 0.0
    %286 = vmatprep.subr.mxu0 0.0
    %287 = vmatpush1.xpose.msra.mxu0 0.0
    %288 = vmatprep.subr.mxu0 0.0
    %289 = vmatpush1.xpose.msra.mxu0 0.0
    %290 = vmatprep.subr.mxu0 0.0
    %291 = vmatpush1.xpose.msra.mxu0 0.0
    %292 = vmatprep.subr.mxu0 0.0
    %293 = vmatpush1.xpose.msra.mxu0 0.0
    %294 = vmatprep.subr.mxu0 0.0
    %295 = vmatpush1.xpose.msra.mxu0 0.0
    %296 = vmatprep.subr.mxu0 0.0
    %297 = vmatpush1.xpose.msra.mxu0 0.0
    %298 = vmatprep.subr.mxu0 0.0
    %299 = vmatpush1.xpose.msra.mxu0 0.0
    %300 = vmatprep.subr.mxu0 0.0
    %301 = vmatpush1.xpose.msra.mxu0 0.0
    %302 = vmatprep.mubr.f32.mxu0 0.0
    %303 = vmatmul.mubr.f32.gmra.mrb[0].mxu0 %v58
    %v304 = vpop.f32.mrb[0].mxu0
    %v305 = vadd.f32 %v39, %v304
    %v306 = vpop.f32.mrb[0].mxu0
    %307 = vmatprep.mubr.f32.mxu0 0.0
    %308 = vmatmul.mubr.f32.gmra.mrb[0].mxu0 %v61
    %v309 = vpop.f32.mrb[0].mxu0
    %v310 = vadd.f32 %v44, %v309
    %v311 = vpop.f32.mrb[0].mxu0
    %312 = vmatprep.mubr.f32.mxu0 0.0
    %313 = vmatmul.mubr.f32.gmra.mrb[0].mxu0 %v64
    %v314 = vpop.f32.mrb[0].mxu0
    %v315 = vadd.f32 %v49, %v314
    %v316 = vpop.f32.mrb[0].mxu0
    %317 = vmatprep.mubr.f32.mxu0 0.0
    %318 = vmatmul.mubr.f32.gmra.mrb[0].mxu0 %v67
    %v319 = vpop.f32.mrb[0].mxu0
    %v320 = vadd.f32 %v54, %v319
    %v321 = vpop.f32.mrb[0].mxu0
    %322 = vdwg.mxu0
    %s323 = scalar_lea.vmem %s0, 32
    %v324 = vld [vmem:[%s323] sm:$0xff]
    %v325 = vld [vmem:[%s323 + $0x8] sm:$0xff]
    %v326 = vld [vmem:[%s323 + $0x10] sm:$0xff]
    %v327 = vld [vmem:[%s323 + $0x18] sm:$0xff]
    %329 = vset.pattern.permute.xlu0 0
    %330 = vperm.xlu0 %329, %v324
    %v331 = vpop.permute.xlu0 %330
    %334 = vset.pattern.permute.xlu0 0
    %335 = vperm.xlu0 %334, %v325
    %v336 = vpop.permute.xlu0 %335
    %339 = vset.pattern.permute.xlu0 0
    %340 = vperm.xlu0 %339, %v326
    %v341 = vpop.permute.xlu0 %340
    %344 = vset.pattern.permute.xlu0 0
    %345 = vperm.xlu0 %344, %v327
    %v346 = vpop.permute.xlu0 %345
    %v348 = vadd.f32 %v331, %v305
    %v349 = vadd.f32 %v336, %v310
    %v350 = vadd.f32 %v341, %v315
    %v351 = vadd.f32 %v346, %v320
    %v352 = vtanh.pop %v348
    %v353 = vtanh.pop %v349
    %v354 = vtanh.pop %v350
    %v355 = vtanh.pop %v351
    %v356 = vmul.f32 %v192, %v352
    %v357 = vmul.f32 %v197, %v353
    %v358 = vmul.f32 %v202, %v354
    %v359 = vmul.f32 %v207, %v355
    %v360 = vsel %vm213, %v356, 0.0
    %v361 = vsel %vm213, %v357, 0.0
    %v362 = vadd.f32 %v360, %v361
    %v363 = vsel %vm213, %v358, 0.0
    %v364 = vadd.f32 %v362, %v363
    %v365 = vsel %vm213, %v359, 0.0
    %v366 = vadd.f32 %v364, %v365
    %v367 = vrot.slane %v366, 4
    %v368 = vadd.f32 %v366, %v367
    %v369 = vrot.slane %v368, 2
    %v370 = vadd.f32 %v368, %v369
    %v371 = vrot.slane %v370, 1
    %v372 = vadd.f32 %v370, %v371
    %s373 = scalar_lea.vmem %s5, 32
    %374 = vst.msk [vmem:[%s373] sm:$0xff] %vm213, %v305
    %375 = vst.msk [vmem:[%s373 + $0x8] sm:$0xff] %vm213, %v310
    %376 = vst.msk [vmem:[%s373 + $0x10] sm:$0xff] %vm213, %v315
    %377 = vst.msk [vmem:[%s373 + $0x18] sm:$0xff] %vm213, %v320
    %s378 = scalar_lea.vmem [#allocation2], 1
    %379 = vst.msk [vmem:[%s378] sm:$0x1] %vm231, %v372
    // Predicated region
    $region22: #{tpu_custom_call.1} parent=1 // pred_check
      _
    $region23: #{tpu_custom_call.1} parent=1 // pred_check_branch
      %381 = sbr.rel (0) target = $region25
    $region24: #{tpu_custom_call.1} parent=1 // pred_region
      _
    $region25: #{tpu_custom_call.1} parent=1 // pred_fallthru
      _
    // Predicated region
    $region26: #{tpu_custom_call.1} parent=1 // pred_check
      _
    $region27: #{tpu_custom_call.1} parent=1 // pred_check_branch
      %383 = sbr.rel (0) target = $region29
    $region28: #{tpu_custom_call.1} parent=1 // pred_region
      %s385 = ssub.s32 32, 32
      %386 = vsyncadd [#allocation3], %s385
      %s387 = sshll.u32 [#allocation2], 4
      %s388 = int_to_ptr.vmem [resolvable:$true] %s387
      %393 = dma.vmem_to_hbm [thread:$0]  %s388, 32, %s6, [#allocation3], 16, 16, 1
    $region29: #{tpu_custom_call.1} parent=1 // pred_fallthru
      _
    // Predicated region
    $region30: #{tpu_custom_call.1} parent=1 // pred_check
      _
    $region31: #{tpu_custom_call.1} parent=1 // pred_check_branch
      %395 = sbr.rel (0) target = $region33
    $region32: #{tpu_custom_call.1} parent=1 // pred_region
      _
    $region33: #{tpu_custom_call.1} parent=1 // pred_fallthru
      _
    // Predicated region
    $region34: #{tpu_custom_call.1} parent=1 // pred_check
      _
    $region35: #{tpu_custom_call.1} parent=1 // pred_check_branch
      %397 = sbr.rel (0) target = $region37
    $region36: #{tpu_custom_call.1} parent=1 // pred_region
      %398 = dma.done [#allocation3], 32
    $region37: #{tpu_custom_call.1} parent=1 // pred_fallthru
      _
    %399 = vsyncpa [#allocation3], 1

</llo_original>
